<compile_context>
chip_gen: v6e
topology: v6e:2x2x1
jax: 0.10.0
libtpu: 0.0.40
codegen_flags: <defaults>
</compile_context>

<pallas_src>
import jax
import jax.numpy as jnp
from jax.experimental import pallas as pl
from jax.experimental.pallas import tpu as pltpu

# ---------------- model hyper-parameters (small, deterministic) -------------
B        = 8                 # batch
N_GENRES = 18                # fm_feature_size - 2
FM_FEAT  = N_GENRES + 2      # = 20  (uid, mid, genres)
DS       = 12                # RL state dim -> x[:, :-fm_feature_size]
DU = DM = DG = 16            # u_emb_dim, m_emb_dim, g_emb_dim
H0, H1   = 32, 32            # hidden_num0, hidden_num1
DOUT     = 4                 # output_num
MAX_UID  = 50
MAX_MID  = 100
N_U      = MAX_UID + 1       # 51
N_M      = MAX_MID + 1       # 101
XDIM     = DS + FM_FEAT      # 32 raw input columns
K0       = XDIM + N_U + N_M  # 184 = fused layer-0 contraction dim
CLAMP_MIN, CLAMP_MAX = -1.0, 1.0
LN_EPS   = 1e-5

# Packed-parameter row offsets inside the single [256, 32] buffer
# (all offsets/sizes are multiples of 8 -> sublane aligned).
_OFF_W0  = 0                 # rows   0..183 : fused layer-0 weight  [184, 32]
_OFF_W1  = K0                # rows 184..215 : hidden_layer weight   [ 32, 32]
_OFF_W2  = K0 + H0           # rows 216..247 : lane-padded out weight[ 32, 32]
_OFF_VEC = K0 + H0 + H1      # rows 248..255 : b0,ln0g,ln0b,b1,ln1g,ln1b,b2,0
P_ROWS   = _OFF_VEC + 8      # 256


def _layernorm_fused(v, gamma, beta, eps=LN_EPS):
    """Single-pass LayerNorm (sum & sum-of-squares together); var clamped >= 0."""
    inv_n = 1.0 / v.shape[-1]
    s1 = jnp.sum(v, axis=-1, keepdims=True)
    s2 = jnp.sum(v * v, axis=-1, keepdims=True)
    mu = s1 * inv_n
    var = jnp.maximum(s2 * inv_n - mu * mu, 0.0)
    return (v - mu) * jax.lax.rsqrt(var + eps) * gamma + beta


def net_kernel(x_ref, p_ref, out_ref):
    f32 = jnp.float32
    x = x_ref[...]                                        # [BB, XDIM]
    bb = x.shape[0]

    # Static sublane slices off the single packed parameter ref.
    w0  = p_ref[_OFF_W0:_OFF_W0 + K0, :]                  # [184, H0]
    w1  = p_ref[_OFF_W1:_OFF_W1 + H0, :]                  # [H0, H1]
    w2  = p_ref[_OFF_W2:_OFF_W2 + H1, :]                  # [H1, 32] (cols >= DOUT are 0)
    vec = p_ref[_OFF_VEC:_OFF_VEC + 8, :]                 # [8, 32] all bias/LN rows
    b0, ln0g, ln0b = vec[0:1, :], vec[1:2, :], vec[2:3, :]
    b1, ln1g, ln1b = vec[3:4, :], vec[4:5, :], vec[5:6, :]
    b2 = vec[6:7, :]

    # Embedding lookups as a single combined one-hot at fused column offsets.
    uid = jnp.round(x[:, DS:DS + 1]).astype(jnp.int32)    # [BB, 1]
    mid = jnp.round(x[:, DS + 1:DS + 2]).astype(jnp.int32)
    lane = jax.lax.broadcasted_iota(jnp.int32, (bb, N_U + N_M), 1)
    oh = jnp.logical_or(lane == uid, lane == (mid + N_U)).astype(f32)  # [BB, 152]

    # Fused layer 0: one [BB, 184] x [184, H0] MXU pass (state + genres via x,
    # uid/mid columns of x hit zero rows; embeddings via the one-hot block).
    operand = jnp.concatenate([x, oh], axis=1)            # [BB, 184]
    h0 = jnp.dot(operand, w0, preferred_element_type=f32) + b0
    h0 = jnp.maximum(_layernorm_fused(h0, ln0g, ln0b), 0.0)

    h1 = jnp.dot(h0, w1, preferred_element_type=f32) + b1
    h1 = jnp.maximum(_layernorm_fused(h1, ln1g, ln1b), 0.0)

    out = jnp.dot(h1, w2, preferred_element_type=f32) + b2      # [BB, 32]
    # Lane-dense store of the full 32-wide result; caller slices [:, :DOUT].
    out_ref[...] = jnp.clip(out, CLAMP_MIN, CLAMP_MAX)


def fold_params(p):
    """One-time algebraic folding of the PyTorch parameters into one [256,32] buffer."""
    f32 = jnp.float32
    # Layer-0 weight over raw x columns: state rows, zero rows for uid/mid,
    # g_embedding folded in for the genre columns.
    wx = jnp.zeros((XDIM, H0), f32)
    wx = wx.at[:DS, :].set(p["w0s"])
    wx = wx.at[DS + 2:, :].set(p["gW"] @ p["w0g"])
    wu = p["u_table"] @ p["w0u"]                           # [N_U, H0]
    wm = p["m_table"] @ p["w0m"]                           # [N_M, H0]
    w0_all = jnp.concatenate([wx, wu, wm], axis=0)         # [184, H0]
    b0f = p["b0"] + p["gb"] @ p["w0g"]                     # [1, H0]
    w2_pad = jnp.zeros((H1, H1), f32).at[:, :DOUT].set(p["w2"])
    b2_pad = jnp.zeros((1, H1), f32).at[:, :DOUT].set(p["b2"])
    vecs = jnp.concatenate(
        [b0f, p["ln0g"], p["ln0b"], p["b1"], p["ln1g"], p["ln1b"],
         b2_pad, jnp.zeros((1, H1), f32)], axis=0)         # [8, H1]
    packed = jnp.concatenate([w0_all, p["w1"], w2_pad, vecs], axis=0)
    assert packed.shape == (P_ROWS, H1), packed.shape
    return packed


def net_forward(x, packed):
    """x: [B, XDIM] float32 (PyTorch column layout), packed: [256, 32] folded params."""
    bn, xd = x.shape
    assert xd == XDIM
    bb = min(bn, 256)                 # batch block (full batch for small B)
    assert bn % bb == 0
    flops = 2 * bn * (K0 * H0 + H0 * H1 + H1 * H1)
    bytes_accessed = 4 * (bn * XDIM + P_ROWS * H1 + bn * H1)
    out = pl.pallas_call(
        net_kernel,
        out_shape=jax.ShapeDtypeStruct((bn, H1), jnp.float32),
        grid=(bn // bb,),
        in_specs=[pl.BlockSpec((bb, XDIM), lambda i: (i, 0)),
                  pl.BlockSpec((P_ROWS, H1), lambda i: (0, 0))],   # weights resident
        out_specs=pl.BlockSpec((bb, H1), lambda i: (i, 0)),
        compiler_params=pltpu.CompilerParams(dimension_semantics=("parallel",)),
        cost_estimate=pl.CostEstimate(flops=flops,
                                      transcendentals=2 * bn,
                                      bytes_accessed=bytes_accessed),
    )(x, packed)
    return out[:, :DOUT]              # lane-dense kernel output; tiny slice in XLA


def make_params(key):
    ks = jax.random.split(key, 16)
    n = lambda k, s: (jax.random.normal(k, s, dtype=jnp.float32) * 0.1)
    return {
        "u_table": n(ks[0], (N_U, DU)),
        "m_table": n(ks[1], (N_M, DM)),
        "gW":  n(ks[2], (N_GENRES, DG)), "gb":  n(ks[3], (1, DG)),
        "w0s": n(ks[4], (DS, H0)),
        "w0u": n(ks[5], (DU, H0)),
        "w0m": n(ks[6], (DM, H0)),
        "w0g": n(ks[7], (DG, H0)),
        "b0":  n(ks[8], (1, H0)),
        "ln0g": jnp.ones((1, H0), jnp.float32), "ln0b": jnp.zeros((1, H0), jnp.float32),
        "w1":  n(ks[9], (H0, H1)), "b1": n(ks[10], (1, H1)),
        "ln1g": jnp.ones((1, H1), jnp.float32), "ln1b": jnp.zeros((1, H1), jnp.float32),
        "w2":  n(ks[11], (H1, DOUT)), "b2": n(ks[12], (1, DOUT)),
    }


def reference_forward(x, p):
    """Pure-JAX reference mirroring the PyTorch forward exactly (unfolded params)."""
    def ln(v, g, b, eps=LN_EPS):
        mu = jnp.mean(v, axis=-1, keepdims=True)
        var = jnp.mean((v - mu) ** 2, axis=-1, keepdims=True)
        return (v - mu) * jax.lax.rsqrt(var + eps) * g + b
    state  = x[:, :-FM_FEAT]
    uids   = x[:, -FM_FEAT].astype(jnp.int32)
    mids   = x[:, -(FM_FEAT - 1)].astype(jnp.int32)
    genres = x[:, -(FM_FEAT - 2):]
    uemb = p["u_table"][uids]
    memb = p["m_table"][mids]
    gemb = genres @ p["gW"] + p["gb"]
    h = jnp.concatenate([state, uemb, memb, gemb], axis=1)
    W0 = jnp.concatenate([p["w0s"], p["w0u"], p["w0m"], p["w0g"]], axis=0)
    h = h @ W0 + p["b0"]
    h = jnp.maximum(ln(h, p["ln0g"], p["ln0b"]), 0.0)
    h = h @ p["w1"] + p["b1"]
    h = jnp.maximum(ln(h, p["ln1g"], p["ln1b"]), 0.0)
    h = h @ p["w2"] + p["b2"]
    return jnp.clip(h, CLAMP_MIN, CLAMP_MAX)


if __name__ == "__main__":
    key = jax.random.PRNGKey(0)
    k_p, k_s, k_u, k_m, k_g = jax.random.split(key, 5)
    params = make_params(k_p)
    packed = jax.block_until_ready(fold_params(params))   # one-time fold

    # x columns exactly as in the PyTorch convention:
    # [ state (DS) | uid (1) | mid (1) | genres (N_GENRES) ]
    state  = jax.random.normal(k_s, (B, DS), dtype=jnp.float32)
    uids   = jax.random.randint(k_u, (B, 1), 0, N_U).astype(jnp.float32)
    mids   = jax.random.randint(k_m, (B, 1), 0, N_M).astype(jnp.float32)
    genres = jax.random.bernoulli(k_g, 0.3, (B, N_GENRES)).astype(jnp.float32)
    x = jnp.concatenate([state, uids, mids, genres], axis=1)   # [B, XDIM]

    out = jax.block_until_ready(net_forward(x, packed))
    ref = jax.block_until_ready(reference_forward(x, params))

    assert out.shape == (B, DOUT), out.shape
    assert jnp.allclose(out, ref, atol=2e-5, rtol=2e-5), (out, ref)
    # NOTE: out-of-range uid/mid yield zero embeddings here (one-hot matmul),
    # whereas PyTorch nn.Embedding would raise; exact for all valid ids.
    print("KERNEL_OK")
</pallas_src>

<mosaic_0001>
module attributes {stable_mosaic.version = 11 : i64} {
  func.func @net_kernel(%arg0: i32, %arg1: memref<8x32xf32, #tpu.memory_space<vmem>>, %arg2: memref<256x32xf32, #tpu.memory_space<vmem>>, %arg3: memref<8x32xf32, #tpu.memory_space<vmem>>) attributes {dimension_semantics = [#tpu.dimension_semantics<parallel>], iteration_bounds = array<i64: 1>, scalar_prefetch = 0 : i64, scratch_operands = 0 : i64, tpu.core_type = #tpu.core_type<tc>, window_params = [{transform_indices = @transform_0, window_bounds = array<i64: 8, 32>}, {pipeline_mode = #tpu.pipeline_mode<synchronous>, transform_indices = @transform_1, window_bounds = array<i64: 256, 32>}, {transform_indices = @transform_2, window_bounds = array<i64: 8, 32>}]} {
    %c0 = arith.constant 0 : index
    %c0_0 = arith.constant 0 : index
    %0 = vector.load %arg1[%c0, %c0_0] : memref<8x32xf32, #tpu.memory_space<vmem>>, vector<8x32xf32>
    %c0_1 = arith.constant 0 : index
    %c0_2 = arith.constant 0 : index
    %1 = vector.load %arg2[%c0_1, %c0_2] : memref<256x32xf32, #tpu.memory_space<vmem>>, vector<184x32xf32>
    %c184 = arith.constant 184 : index
    %c0_3 = arith.constant 0 : index
    %2 = vector.load %arg2[%c184, %c0_3] : memref<256x32xf32, #tpu.memory_space<vmem>>, vector<32x32xf32>
    %c216 = arith.constant 216 : index
    %c0_4 = arith.constant 0 : index
    %3 = vector.load %arg2[%c216, %c0_4] : memref<256x32xf32, #tpu.memory_space<vmem>>, vector<32x32xf32>
    %c248 = arith.constant 248 : index
    %c0_5 = arith.constant 0 : index
    %4 = vector.load %arg2[%c248, %c0_5] : memref<256x32xf32, #tpu.memory_space<vmem>>, vector<8x32xf32>
    %5 = vector.extract_strided_slice %4 {offsets = [0, 0], sizes = [1, 32], strides = [1, 1]} : vector<8x32xf32> to vector<1x32xf32>
    %6 = vector.extract_strided_slice %4 {offsets = [1, 0], sizes = [1, 32], strides = [1, 1]} : vector<8x32xf32> to vector<1x32xf32>
    %7 = vector.extract_strided_slice %4 {offsets = [2, 0], sizes = [1, 32], strides = [1, 1]} : vector<8x32xf32> to vector<1x32xf32>
    %8 = vector.extract_strided_slice %4 {offsets = [3, 0], sizes = [1, 32], strides = [1, 1]} : vector<8x32xf32> to vector<1x32xf32>
    %9 = vector.extract_strided_slice %4 {offsets = [4, 0], sizes = [1, 32], strides = [1, 1]} : vector<8x32xf32> to vector<1x32xf32>
    %10 = vector.extract_strided_slice %4 {offsets = [5, 0], sizes = [1, 32], strides = [1, 1]} : vector<8x32xf32> to vector<1x32xf32>
    %11 = vector.extract_strided_slice %4 {offsets = [6, 0], sizes = [1, 32], strides = [1, 1]} : vector<8x32xf32> to vector<1x32xf32>
    %12 = vector.extract_strided_slice %0 {offsets = [0, 12], sizes = [8, 1], strides = [1, 1]} : vector<8x32xf32> to vector<8x1xf32>
    %13 = math.roundeven %12 : vector<8x1xf32>
    %14 = arith.fptosi %13 : vector<8x1xf32> to vector<8x1xi32>
    %15 = vector.extract_strided_slice %0 {offsets = [0, 13], sizes = [8, 1], strides = [1, 1]} : vector<8x32xf32> to vector<8x1xf32>
    %16 = math.roundeven %15 : vector<8x1xf32>
    %17 = arith.fptosi %16 : vector<8x1xf32> to vector<8x1xi32>
    %18 = tpu.iota {dimensions = array<i32: 1>} : vector<8x152xi32>
    %19 = vector.broadcast %14 : vector<8x1xi32> to vector<8x152xi32>
    %20 = arith.cmpi eq, %18, %19 : vector<8x152xi32>
    %c51_i32 = arith.constant 51 : i32
    %21 = vector.broadcast %c51_i32 : i32 to vector<8x1xi32>
    %22 = arith.addi %17, %21 : vector<8x1xi32>
    %23 = vector.broadcast %22 : vector<8x1xi32> to vector<8x152xi32>
    %24 = arith.cmpi eq, %18, %23 : vector<8x152xi32>
    %25 = arith.ori %20, %24 : vector<8x152xi1>
    %26 = arith.extui %25 : vector<8x152xi1> to vector<8x152xi32>
    %27 = arith.sitofp %26 : vector<8x152xi32> to vector<8x152xf32>
    %28 = tpu.concatenate %0, %27 in 1 : vector<8x32xf32>, vector<8x152xf32> -> vector<8x184xf32>
    %cst = arith.constant dense<0.000000e+00> : vector<8x32xf32>
    %29 = tpu.matmul %28, %1, %cst {dimension_numbers = #tpu.dot_dimension_numbers<[1], [0], [0], [1], [0, 0, 1, 1], [], []>} : vector<8x184xf32>, vector<184x32xf32>, vector<8x32xf32> -> vector<8x32xf32>
    %30 = vector.broadcast %5 : vector<1x32xf32> to vector<8x32xf32>
    %31 = arith.addf %29, %30 : vector<8x32xf32>
    %cst_6 = arith.constant dense<0.000000e+00> : vector<8xf32>
    %32 = vector.multi_reduction <add>, %31, %cst_6 [1] : vector<8x32xf32> to vector<8xf32>
    %33 = vector.shape_cast %32 : vector<8xf32> to vector<8x1xf32>
    %34 = arith.mulf %31, %31 : vector<8x32xf32>
    %cst_7 = arith.constant dense<0.000000e+00> : vector<8xf32>
    %35 = vector.multi_reduction <add>, %34, %cst_7 [1] : vector<8x32xf32> to vector<8xf32>
    %36 = vector.shape_cast %35 : vector<8xf32> to vector<8x1xf32>
    %cst_8 = arith.constant 3.125000e-02 : f32
    %37 = vector.broadcast %cst_8 : f32 to vector<8x1xf32>
    %38 = arith.mulf %33, %37 : vector<8x1xf32>
    %cst_9 = arith.constant 3.125000e-02 : f32
    %39 = vector.broadcast %cst_9 : f32 to vector<8x1xf32>
    %40 = arith.mulf %36, %39 : vector<8x1xf32>
    %41 = arith.mulf %38, %38 : vector<8x1xf32>
    %42 = arith.subf %40, %41 : vector<8x1xf32>
    %cst_10 = arith.constant 0.000000e+00 : f32
    %43 = vector.broadcast %cst_10 : f32 to vector<8x1xf32>
    %44 = arith.maximumf %42, %43 : vector<8x1xf32>
    %45 = vector.broadcast %38 : vector<8x1xf32> to vector<8x32xf32>
    %46 = arith.subf %31, %45 : vector<8x32xf32>
    %cst_11 = arith.constant 9.99999974E-6 : f32
    %47 = vector.broadcast %cst_11 : f32 to vector<8x1xf32>
    %48 = arith.addf %44, %47 : vector<8x1xf32>
    %49 = math.rsqrt %48 : vector<8x1xf32>
    %50 = vector.broadcast %49 : vector<8x1xf32> to vector<8x32xf32>
    %51 = arith.mulf %46, %50 : vector<8x32xf32>
    %52 = vector.broadcast %6 : vector<1x32xf32> to vector<8x32xf32>
    %53 = arith.mulf %51, %52 : vector<8x32xf32>
    %54 = vector.broadcast %7 : vector<1x32xf32> to vector<8x32xf32>
    %55 = arith.addf %53, %54 : vector<8x32xf32>
    %cst_12 = arith.constant 0.000000e+00 : f32
    %56 = vector.broadcast %cst_12 : f32 to vector<8x32xf32>
    %57 = arith.maximumf %55, %56 : vector<8x32xf32>
    %cst_13 = arith.constant dense<0.000000e+00> : vector<8x32xf32>
    %58 = tpu.matmul %57, %2, %cst_13 {dimension_numbers = #tpu.dot_dimension_numbers<[1], [0], [0], [1], [0, 0, 1, 1], [], []>} : vector<8x32xf32>, vector<32x32xf32>, vector<8x32xf32> -> vector<8x32xf32>
    %59 = vector.broadcast %8 : vector<1x32xf32> to vector<8x32xf32>
    %60 = arith.addf %58, %59 : vector<8x32xf32>
    %cst_14 = arith.constant dense<0.000000e+00> : vector<8xf32>
    %61 = vector.multi_reduction <add>, %60, %cst_14 [1] : vector<8x32xf32> to vector<8xf32>
    %62 = vector.shape_cast %61 : vector<8xf32> to vector<8x1xf32>
    %63 = arith.mulf %60, %60 : vector<8x32xf32>
    %cst_15 = arith.constant dense<0.000000e+00> : vector<8xf32>
    %64 = vector.multi_reduction <add>, %63, %cst_15 [1] : vector<8x32xf32> to vector<8xf32>
    %65 = vector.shape_cast %64 : vector<8xf32> to vector<8x1xf32>
    %cst_16 = arith.constant 3.125000e-02 : f32
    %66 = vector.broadcast %cst_16 : f32 to vector<8x1xf32>
    %67 = arith.mulf %62, %66 : vector<8x1xf32>
    %cst_17 = arith.constant 3.125000e-02 : f32
    %68 = vector.broadcast %cst_17 : f32 to vector<8x1xf32>
    %69 = arith.mulf %65, %68 : vector<8x1xf32>
    %70 = arith.mulf %67, %67 : vector<8x1xf32>
    %71 = arith.subf %69, %70 : vector<8x1xf32>
    %cst_18 = arith.constant 0.000000e+00 : f32
    %72 = vector.broadcast %cst_18 : f32 to vector<8x1xf32>
    %73 = arith.maximumf %71, %72 : vector<8x1xf32>
    %74 = vector.broadcast %67 : vector<8x1xf32> to vector<8x32xf32>
    %75 = arith.subf %60, %74 : vector<8x32xf32>
    %cst_19 = arith.constant 9.99999974E-6 : f32
    %76 = vector.broadcast %cst_19 : f32 to vector<8x1xf32>
    %77 = arith.addf %73, %76 : vector<8x1xf32>
    %78 = math.rsqrt %77 : vector<8x1xf32>
    %79 = vector.broadcast %78 : vector<8x1xf32> to vector<8x32xf32>
    %80 = arith.mulf %75, %79 : vector<8x32xf32>
    %81 = vector.broadcast %9 : vector<1x32xf32> to vector<8x32xf32>
    %82 = arith.mulf %80, %81 : vector<8x32xf32>
    %83 = vector.broadcast %10 : vector<1x32xf32> to vector<8x32xf32>
    %84 = arith.addf %82, %83 : vector<8x32xf32>
    %cst_20 = arith.constant 0.000000e+00 : f32
    %85 = vector.broadcast %cst_20 : f32 to vector<8x32xf32>
    %86 = arith.maximumf %84, %85 : vector<8x32xf32>
    %cst_21 = arith.constant dense<0.000000e+00> : vector<8x32xf32>
    %87 = tpu.matmul %86, %3, %cst_21 {dimension_numbers = #tpu.dot_dimension_numbers<[1], [0], [0], [1], [0, 0, 1, 1], [], []>} : vector<8x32xf32>, vector<32x32xf32>, vector<8x32xf32> -> vector<8x32xf32>
    %88 = vector.broadcast %11 : vector<1x32xf32> to vector<8x32xf32>
    %89 = arith.addf %87, %88 : vector<8x32xf32>
    %cst_22 = arith.constant -1.000000e+00 : f32
    %cst_23 = arith.constant 1.000000e+00 : f32
    %90 = vector.broadcast %cst_22 : f32 to vector<8x32xf32>
    %91 = arith.maximumf %90, %89 : vector<8x32xf32>
    %92 = vector.broadcast %cst_23 : f32 to vector<8x32xf32>
    %93 = arith.minimumf %92, %91 : vector<8x32xf32>
    %c0_24 = arith.constant 0 : index
    %c0_25 = arith.constant 0 : index
    %94 = vector.load %arg3[%c0_24, %c0_25] : memref<8x32xf32, #tpu.memory_space<vmem>>, vector<8x32xf32>
    tpu.vector_store %arg3[%c0_24, %c0_25], %93 {strides = array<i32>} : memref<8x32xf32, #tpu.memory_space<vmem>>, vector<8x32xf32>,
    return
  }
  func.func @transform_0(%arg0: i32) -> (i32, i32) {
    %c0_i32 = arith.constant 0 : i32
    %c0_i32_0 = arith.constant 0 : i32
    return %arg0, %c0_i32 : i32, i32
  }
  func.func @transform_1(%arg0: i32) -> (i32, i32) {
    %c0_i32 = arith.constant 0 : i32
    %c0_i32_0 = arith.constant 0 : i32
    %c0_i32_1 = arith.constant 0 : i32
    return %c0_i32, %c0_i32_0 : i32, i32
  }
  func.func @transform_2(%arg0: i32) -> (i32, i32) {
    %c0_i32 = arith.constant 0 : i32
    %c0_i32_0 = arith.constant 0 : i32
    return %arg0, %c0_i32 : i32, i32
  }
}

</mosaic_0001>

<llo_original>
// kernel: tpu_custom_call.1
$region0: #{tpu_custom_call.1}
  #allocation0 [shape = 'u32[]', space=smem, size = 0x4, offset = 0x4, fixed_abs, tag = 'smem constant byte address 0x4 - core index']
  #allocation1 [shape = 'u32[144,128]{1,0:T(1,128)}', space=vmem, size = 0x12000, scoped, tag = 'internal scratch']
  %s0 = inlined_call_operand.vmem [shape: f32[8,32], index: 0, kind: input, shape index: {}]
  %s1 = inlined_call_operand.vmem [shape: f32[256,32], index: 1, kind: input, shape index: {}]
  %s2 = inlined_call_operand.hbm [shape: f32[8,32], index: 2, kind: output, shape index: {}]
  %s3 = sld [smem:[#allocation0]]
  $region18: #{tpu_custom_call.1} parent=0
    _
  %s5 = ssub.s32 1, %s3
  %s6 = scalar_select 0, %s5, %s3
  $region1: #{tpu_custom_call.1} parent=0
    #allocation2 [shape = 'u8[4096]{0}', space=vmem, size = 0x1000, scoped, tag = 'output window, operand 0, single buffered']
    #allocation3 [shape = 's32[1]{0}', space=sflag, size = 0x4, scoped, tag = 'scoped memory for tpu_custom_call.1']
    %7 = vsyncpa [#allocation3], 0
    // Predicated region
    $region2: #{tpu_custom_call.1} parent=1 // pred_check
      _
    $region3: #{tpu_custom_call.1} parent=1 // pred_check_branch
      %9 = sbr.rel (0) target = $region5
    $region4: #{tpu_custom_call.1} parent=1 // pred_region
      _
    $region5: #{tpu_custom_call.1} parent=1 // pred_fallthru
      _
    // Predicated region
    $region6: #{tpu_custom_call.1} parent=1 // pred_check
      _
    $region7: #{tpu_custom_call.1} parent=1 // pred_check_branch
      %11 = sbr.rel (0) target = $region9
    $region8: #{tpu_custom_call.1} parent=1 // pred_region
      _
    $region9: #{tpu_custom_call.1} parent=1 // pred_fallthru
      _
    %v12 = vld [vmem:[%s0] sm:$0xff]
    %v13 = vld [vmem:[%s1] sm:$0xff]
    %v14 = vld [vmem:[%s1 + $0x8] sm:$0xff]
    %v15 = vld [vmem:[%s1 + $0x10] sm:$0xff]
    %v16 = vld [vmem:[%s1 + $0x18] sm:$0xff]
    %v17 = vld [vmem:[%s1 + $0x20] sm:$0xff]
    %v18 = vld [vmem:[%s1 + $0x28] sm:$0xff]
    %v19 = vld [vmem:[%s1 + $0x30] sm:$0xff]
    %v20 = vld [vmem:[%s1 + $0x38] sm:$0xff]
    %v21 = vld [vmem:[%s1 + $0x40] sm:$0xff]
    %v22 = vld [vmem:[%s1 + $0x48] sm:$0xff]
    %v23 = vld [vmem:[%s1 + $0x50] sm:$0xff]
    %v24 = vld [vmem:[%s1 + $0x58] sm:$0xff]
    %v25 = vld [vmem:[%s1 + $0x60] sm:$0xff]
    %v26 = vld [vmem:[%s1 + $0x68] sm:$0xff]
    %v27 = vld [vmem:[%s1 + $0x70] sm:$0xff]
    %v28 = vld [vmem:[%s1 + $0x78] sm:$0xff]
    %v29 = vld [vmem:[%s1 + $0x80] sm:$0xff]
    %v30 = vld [vmem:[%s1 + $0x88] sm:$0xff]
    %v31 = vld [vmem:[%s1 + $0x90] sm:$0xff]
    %v32 = vld [vmem:[%s1 + $0x98] sm:$0xff]
    %v33 = vld [vmem:[%s1 + $0xa0] sm:$0xff]
    %v34 = vld [vmem:[%s1 + $0xa8] sm:$0xff]
    %v35 = vld [vmem:[%s1 + $0xb0] sm:$0xff]
    %v36 = vld [vmem:[%s1 + $0xb8] sm:$0xff]
    %v37 = vld [vmem:[%s1 + $0xc0] sm:$0xff]
    %v38 = vld [vmem:[%s1 + $0xc8] sm:$0xff]
    %v39 = vld [vmem:[%s1 + $0xd0] sm:$0xff]
    %v40 = vld [vmem:[%s1 + $0xd8] sm:$0xff]
    %v41 = vld [vmem:[%s1 + $0xe0] sm:$0xff]
    %v42 = vld [vmem:[%s1 + $0xe8] sm:$0xff]
    %v43 = vld [vmem:[%s1 + $0xf0] sm:$0xff]
    %v44 = vld [vmem:[%s1 + $0xf8] sm:$0xff]
    %v45 = vcvt.f32.s32.ties.to.even %v12
    %v46 = vlaneseq
    %v47 = vand.u32 %v46, 127
    %v48 = vadd.s32 %v47, 128
    %49 = vset.pattern.permute.xlu0 12
    %50 = vperm.xlu0 %49, %v45
    %v51 = vpop.permute.xlu0 %50
    %vm52 = vcmp.eq.s32.totalorder %v47, %v51
    %vm53 = vcmp.eq.s32.totalorder %v48, %v51
    %v54 = vadd.s32 %v45, 51
    %55 = vset.pattern.permute.xlu0 13
    %56 = vperm.xlu0 %55, %v54
    %v57 = vpop.permute.xlu0 %56
    %vm58 = vcmp.eq.s32.totalorder %v47, %v57
    %vm59 = vcmp.eq.s32.totalorder %v48, %v57
    %vm60 = vmor %vm52, %vm58
    %vm61 = vmor %vm53, %vm59
    %v62 = vsel %vm60, 1, 0
    %v63 = vsel %vm61, 1, 0
    %v64 = vcvt.s32.f32 %v62
    %v65 = vcvt.s32.f32 %v63
    %68 = vrot.lane.b32.xlu0 %v64, 32
    %v69 = vpop.permute.xlu0 %68
    %70 = vrot.lane.b32.xlu0 %v65, 32
    %v71 = vpop.permute.xlu0 %70
    %vm72 = vcmask 261120
    %v73 = vsel %vm72, %v69, %v71
    %v75 = vsel %vm72, %v12, %v69
    %v76 = vlaneseq
    %v77 = vshrl.u32 %v76, 7
    %v78 = vsub.s32 0, %v77
    %v79 = vrot.slane %v44, %v78
    %vm80 = vcmask 457728
    %v81 = vsel %vm80, %v73, 0
    %83 = vmatprep.subr.mxu0 0.0
    %84 = vmatpush1.msra.mxu0 %v28
    %85 = vmatprep.subr.mxu0 0.0
    %86 = vmatpush1.msra.mxu0 %v27
    %87 = vmatprep.subr.mxu0 0.0
    %88 = vmatpush1.msra.mxu0 %v26
    %89 = vmatprep.subr.mxu0 0.0
    %90 = vmatpush1.msra.mxu0 %v25
    %91 = vmatprep.subr.mxu0 0.0
    %92 = vmatpush1.msra.mxu0 %v24
    %93 = vmatprep.subr.mxu0 0.0
    %94 = vmatpush1.msra.mxu0 %v23
    %95 = vmatprep.subr.mxu0 0.0
    %96 = vmatpush1.msra.mxu0 %v22
    %97 = vmatprep.subr.mxu0 0.0
    %98 = vmatpush1.msra.mxu0 %v21
    %99 = vmatprep.subr.mxu0 0.0
    %100 = vmatpush1.msra.mxu0 %v20
    %101 = vmatprep.subr.mxu0 0.0
    %102 = vmatpush1.msra.mxu0 %v19
    %103 = vmatprep.subr.mxu0 0.0
    %104 = vmatpush1.msra.mxu0 %v18
    %105 = vmatprep.subr.mxu0 0.0
    %106 = vmatpush1.msra.mxu0 %v17
    %107 = vmatprep.subr.mxu0 0.0
    %108 = vmatpush1.msra.mxu0 %v16
    %109 = vmatprep.subr.mxu0 0.0
    %110 = vmatpush1.msra.mxu0 %v15
    %111 = vmatprep.subr.mxu0 0.0
    %112 = vmatpush1.msra.mxu0 %v14
    %113 = vmatprep.subr.mxu0 0.0
    %114 = vmatpush1.msra.mxu0 %v13
    %115 = vmatprep.subr.mxu0 0.0
    %116 = vmatpush2.msra.mxu0 0.0
    %117 = vmatprep.subr.mxu0 0.0
    %118 = vmatpush2.msra.mxu0 0.0
    %119 = vmatprep.subr.mxu0 0.0
    %120 = vmatpush2.msra.mxu0 0.0
    %121 = vmatprep.subr.mxu0 0.0
    %122 = vmatpush2.msra.mxu0 0.0
    %123 = vmatprep.subr.mxu0 0.0
    %124 = vmatpush2.msra.mxu0 0.0
    %125 = vmatprep.subr.mxu0 0.0
    %126 = vmatpush2.msra.mxu0 0.0
    %127 = vmatprep.subr.mxu0 0.0
    %128 = vmatpush2.msra.mxu0 0.0
    %129 = vmatprep.subr.mxu0 0.0
    %130 = vmatpush2.msra.mxu0 0.0
    %131 = vmatprep.subr.mxu0 0.0
    %132 = vmatpush2.msra.mxu0 0.0
    %133 = vmatprep.subr.mxu0 0.0
    %134 = vmatpush2.msra.mxu0 %v35
    %135 = vmatprep.subr.mxu0 0.0
    %136 = vmatpush2.msra.mxu0 %v34
    %137 = vmatprep.subr.mxu0 0.0
    %138 = vmatpush2.msra.mxu0 %v33
    %139 = vmatprep.subr.mxu0 0.0
    %140 = vmatpush2.msra.mxu0 %v32
    %141 = vmatprep.subr.mxu0 0.0
    %142 = vmatpush2.msra.mxu0 %v31
    %143 = vmatprep.subr.mxu0 0.0
    %144 = vmatpush2.msra.mxu0 %v30
    %145 = vmatprep.subr.mxu0 0.0
    %146 = vmatpush2.msra.mxu0 %v29
    %147 = vmatprep.mubr.f32.mxu0 %v81
    %148 = vmatmul.mubr.f32.gmra.mxu0 %v75
    %v149 = vpop.f32.mrf.mxu0
    %v150 = vadd.f32 %v79, %v149
    %v151 = vpop.f32.mrf.mxu0
    %152 = vdwg.mxu0
    %v153 = vsel %vm72, %v150, 0.0
    %154 = vadd.xlane.f32.xlu0 %v153
    %v155 = vpop.xlane.xlu0 %154
    %v156 = vmul.f32 %v150, %v150
    %v157 = vsel %vm72, %v156, 0.0
    %158 = vadd.xlane.f32.xlu0 %v157
    %v159 = vpop.xlane.xlu0 %158
    %v160 = vmul.f32 %v155, 0.03125
    %v161 = vmul.f32 %v159, 0.03125
    %v162 = vmul.f32 %v160, %v160
    %v163 = vsub.f32 %v161, %v162
    %v164 = vmax.f32 %v163, 0.0
    %v165 = vsub.f32 %v150, %v160
    %v166 = vadd.f32 %v164, 1e-05
    %v167 = vrsqrt.pop %v166
    %v168 = vmul.f32 %v165, %v167
    %v169 = vlaneseq
    %v170 = vshrl.u32 %v169, 7
    %v171 = vsub.s32 1, %v170
    %v172 = vrot.slane %v44, %v171
    %v173 = vmul.f32 %v168, %v172
    %v174 = vlaneseq
    %v175 = vshrl.u32 %v174, 7
    %v176 = vsub.s32 2, %v175
    %v177 = vrot.slane %v44, %v176
    %v178 = vadd.f32 %v173, %v177
    %v179 = vmax.f32 %v178, 0.0
    %v180 = vlaneseq
    %v181 = vshrl.u32 %v180, 7
    %v182 = vsub.s32 3, %v181
    %v183 = vrot.slane %v44, %v182
    %v185 = vsel %vm72, %v179, 0
    %187 = vmatprep.subr.mxu0 0.0
    %188 = vmatpush1.msra.mxu0 0.0
    %189 = vmatprep.subr.mxu0 0.0
    %190 = vmatpush1.msra.mxu0 0.0
    %191 = vmatprep.subr.mxu0 0.0
    %192 = vmatpush1.msra.mxu0 0.0
    %193 = vmatprep.subr.mxu0 0.0
    %194 = vmatpush1.msra.mxu0 0.0
    %195 = vmatprep.subr.mxu0 0.0
    %196 = vmatpush1.msra.mxu0 0.0
    %197 = vmatprep.subr.mxu0 0.0
    %198 = vmatpush1.msra.mxu0 0.0
    %199 = vmatprep.subr.mxu0 0.0
    %200 = vmatpush1.msra.mxu0 0.0
    %201 = vmatprep.subr.mxu0 0.0
    %202 = vmatpush1.msra.mxu0 0.0
    %203 = vmatprep.subr.mxu0 0.0
    %204 = vmatpush1.msra.mxu0 0.0
    %205 = vmatprep.subr.mxu0 0.0
    %206 = vmatpush1.msra.mxu0 0.0
    %207 = vmatprep.subr.mxu0 0.0
    %208 = vmatpush1.msra.mxu0 0.0
    %209 = vmatprep.subr.mxu0 0.0
    %210 = vmatpush1.msra.mxu0 0.0
    %211 = vmatprep.subr.mxu0 0.0
    %212 = vmatpush1.msra.mxu0 %v39
    %213 = vmatprep.subr.mxu0 0.0
    %214 = vmatpush1.msra.mxu0 %v38
    %215 = vmatprep.subr.mxu0 0.0
    %216 = vmatpush1.msra.mxu0 %v37
    %217 = vmatprep.subr.mxu0 0.0
    %218 = vmatpush1.msra.mxu0 %v36
    %219 = vmatprep.subr.mxu0 0.0
    %220 = vmatpush2.msra.mxu0 0.0
    %221 = vmatprep.subr.mxu0 0.0
    %222 = vmatpush2.msra.mxu0 0.0
    %223 = vmatprep.subr.mxu0 0.0
    %224 = vmatpush2.msra.mxu0 0.0
    %225 = vmatprep.subr.mxu0 0.0
    %226 = vmatpush2.msra.mxu0 0.0
    %227 = vmatprep.subr.mxu0 0.0
    %228 = vmatpush2.msra.mxu0 0.0
    %229 = vmatprep.subr.mxu0 0.0
    %230 = vmatpush2.msra.mxu0 0.0
    %231 = vmatprep.subr.mxu0 0.0
    %232 = vmatpush2.msra.mxu0 0.0
    %233 = vmatprep.subr.mxu0 0.0
    %234 = vmatpush2.msra.mxu0 0.0
    %235 = vmatprep.subr.mxu0 0.0
    %236 = vmatpush2.msra.mxu0 0.0
    %237 = vmatprep.subr.mxu0 0.0
    %238 = vmatpush2.msra.mxu0 0.0
    %239 = vmatprep.subr.mxu0 0.0
    %240 = vmatpush2.msra.mxu0 0.0
    %241 = vmatprep.subr.mxu0 0.0
    %242 = vmatpush2.msra.mxu0 0.0
    %243 = vmatprep.subr.mxu0 0.0
    %244 = vmatpush2.msra.mxu0 0.0
    %245 = vmatprep.subr.mxu0 0.0
    %246 = vmatpush2.msra.mxu0 0.0
    %247 = vmatprep.subr.mxu0 0.0
    %248 = vmatpush2.msra.mxu0 0.0
    %249 = vmatprep.subr.mxu0 0.0
    %250 = vmatpush2.msra.mxu0 0.0
    %251 = vmatprep.mubr.f32.mxu0 0.0
    %252 = vmatmul.mubr.f32.gmra.mxu0 %v185
    %v253 = vpop.f32.mrf.mxu0
    %v254 = vadd.f32 %v183, %v253
    %v255 = vpop.f32.mrf.mxu0
    %256 = vdwg.mxu0
    %v257 = vsel %vm72, %v254, 0.0
    %258 = vadd.xlane.f32.xlu0 %v257
    %v259 = vpop.xlane.xlu0 %258
    %v260 = vmul.f32 %v254, %v254
    %v261 = vsel %vm72, %v260, 0.0
    %262 = vadd.xlane.f32.xlu0 %v261
    %v263 = vpop.xlane.xlu0 %262
    %v264 = vmul.f32 %v259, 0.03125
    %v265 = vmul.f32 %v263, 0.03125
    %v266 = vmul.f32 %v264, %v264
    %v267 = vsub.f32 %v265, %v266
    %v268 = vmax.f32 %v267, 0.0
    %v269 = vsub.f32 %v254, %v264
    %v270 = vadd.f32 %v268, 1e-05
    %v271 = vrsqrt.pop %v270
    %v272 = vmul.f32 %v269, %v271
    %v273 = vlaneseq
    %v274 = vshrl.u32 %v273, 7
    %v275 = vsub.s32 4, %v274
    %v276 = vrot.slane %v44, %v275
    %v277 = vmul.f32 %v272, %v276
    %v278 = vlaneseq
    %v279 = vshrl.u32 %v278, 7
    %v280 = vsub.s32 5, %v279
    %v281 = vrot.slane %v44, %v280
    %v282 = vadd.f32 %v277, %v281
    %v283 = vmax.f32 %v282, 0.0
    %v284 = vlaneseq
    %v285 = vshrl.u32 %v284, 7
    %v286 = vsub.s32 6, %v285
    %v287 = vrot.slane %v44, %v286
    %v289 = vsel %vm72, %v283, 0
    %291 = vmatprep.subr.mxu0 0.0
    %292 = vmatpush1.msra.mxu0 0.0
    %293 = vmatprep.subr.mxu0 0.0
    %294 = vmatpush1.msra.mxu0 0.0
    %295 = vmatprep.subr.mxu0 0.0
    %296 = vmatpush1.msra.mxu0 0.0
    %297 = vmatprep.subr.mxu0 0.0
    %298 = vmatpush1.msra.mxu0 0.0
    %299 = vmatprep.subr.mxu0 0.0
    %300 = vmatpush1.msra.mxu0 0.0
    %301 = vmatprep.subr.mxu0 0.0
    %302 = vmatpush1.msra.mxu0 0.0
    %303 = vmatprep.subr.mxu0 0.0
    %304 = vmatpush1.msra.mxu0 0.0
    %305 = vmatprep.subr.mxu0 0.0
    %306 = vmatpush1.msra.mxu0 0.0
    %307 = vmatprep.subr.mxu0 0.0
    %308 = vmatpush1.msra.mxu0 0.0
    %309 = vmatprep.subr.mxu0 0.0
    %310 = vmatpush1.msra.mxu0 0.0
    %311 = vmatprep.subr.mxu0 0.0
    %312 = vmatpush1.msra.mxu0 0.0
    %313 = vmatprep.subr.mxu0 0.0
    %314 = vmatpush1.msra.mxu0 0.0
    %315 = vmatprep.subr.mxu0 0.0
    %316 = vmatpush1.msra.mxu0 %v43
    %317 = vmatprep.subr.mxu0 0.0
    %318 = vmatpush1.msra.mxu0 %v42
    %319 = vmatprep.subr.mxu0 0.0
    %320 = vmatpush1.msra.mxu0 %v41
    %321 = vmatprep.subr.mxu0 0.0
    %322 = vmatpush1.msra.mxu0 %v40
    %323 = vmatprep.subr.mxu0 0.0
    %324 = vmatpush2.msra.mxu0 0.0
    %325 = vmatprep.subr.mxu0 0.0
    %326 = vmatpush2.msra.mxu0 0.0
    %327 = vmatprep.subr.mxu0 0.0
    %328 = vmatpush2.msra.mxu0 0.0
    %329 = vmatprep.subr.mxu0 0.0
    %330 = vmatpush2.msra.mxu0 0.0
    %331 = vmatprep.subr.mxu0 0.0
    %332 = vmatpush2.msra.mxu0 0.0
    %333 = vmatprep.subr.mxu0 0.0
    %334 = vmatpush2.msra.mxu0 0.0
    %335 = vmatprep.subr.mxu0 0.0
    %336 = vmatpush2.msra.mxu0 0.0
    %337 = vmatprep.subr.mxu0 0.0
    %338 = vmatpush2.msra.mxu0 0.0
    %339 = vmatprep.subr.mxu0 0.0
    %340 = vmatpush2.msra.mxu0 0.0
    %341 = vmatprep.subr.mxu0 0.0
    %342 = vmatpush2.msra.mxu0 0.0
    %343 = vmatprep.subr.mxu0 0.0
    %344 = vmatpush2.msra.mxu0 0.0
    %345 = vmatprep.subr.mxu0 0.0
    %346 = vmatpush2.msra.mxu0 0.0
    %347 = vmatprep.subr.mxu0 0.0
    %348 = vmatpush2.msra.mxu0 0.0
    %349 = vmatprep.subr.mxu0 0.0
    %350 = vmatpush2.msra.mxu0 0.0
    %351 = vmatprep.subr.mxu0 0.0
    %352 = vmatpush2.msra.mxu0 0.0
    %353 = vmatprep.subr.mxu0 0.0
    %354 = vmatpush2.msra.mxu0 0.0
    %355 = vmatprep.mubr.f32.mxu0 0.0
    %356 = vmatmul.mubr.f32.gmra.mxu0 %v289
    %v357 = vpop.f32.mrf.mxu0
    %v358 = vadd.f32 %v287, %v357
    %v359 = vpop.f32.mrf.mxu0
    %360 = vdwg.mxu0
    %v361 = vmax.f32 %v358, -1.0
    %v362 = vmin.f32 %v361, 1.0
    %363 = vst.msk [vmem:[#allocation2] sm:$0xff] %vm72, %v362
    // Predicated region
    $region10: #{tpu_custom_call.1} parent=1 // pred_check
      _
    $region11: #{tpu_custom_call.1} parent=1 // pred_check_branch
      %365 = sbr.rel (0) target = $region13
    $region12: #{tpu_custom_call.1} parent=1 // pred_region
      %s367 = ssub.s32 128, 128
      %368 = vsyncadd [#allocation3], %s367
      %s370 = sshll.u32 [#allocation2], 4
      %s371 = int_to_ptr.vmem [resolvable:$true] %s370
      %373 = dma.vmem_to_hbm [thread:$0]  %s371, 128, %s2, [#allocation3]
    $region13: #{tpu_custom_call.1} parent=1 // pred_fallthru
      _
    // Predicated region
    $region14: #{tpu_custom_call.1} parent=1 // pred_check
      _
    $region15: #{tpu_custom_call.1} parent=1 // pred_check_branch
      %375 = sbr.rel (0) target = $region17
    $region16: #{tpu_custom_call.1} parent=1 // pred_region
      %376 = dma.done [#allocation3], 128
    $region17: #{tpu_custom_call.1} parent=1 // pred_fallthru
      _
    %377 = vsyncpa [#allocation3], 1

</llo_original>
